<compile_context>
chip_gen: v5e
topology: v5e:2x2
jax: 0.10.0
libtpu: 0.0.40
codegen_flags: <defaults>
</compile_context>

<pallas_src>
import jax
import jax.numpy as jnp
from jax.experimental import pallas as pl
from jax.experimental.pallas import tpu as pltpu

_MiB = 1024 * 1024


def _round_up(n: int, k: int) -> int:
    return ((n + k - 1) // k) * k


# ----------------------------------------------------------------------------
# Kernels
# ----------------------------------------------------------------------------
def ffn_kernel(x_ref, w1_ref, w3_ref, w2_ref, o_ref, acc_ref):
    # x_ref  : (tm, dim)   bf16   resident across the inter axis
    # w1_ref : (dim, tn)   bf16   slab j of W1^T
    # w3_ref : (dim, tn)   bf16   slab j of W3^T
    # w2_ref : (tn, dim)   bf16   slab j of W2^T
    # o_ref  : (tm, dim)   out dtype (written only on the last inter slab)
    # acc_ref: (tm, dim)   f32 scratch accumulator
    j = pl.program_id(1)
    x = x_ref[...]
    h1 = jnp.dot(x, w1_ref[...], preferred_element_type=jnp.float32)   # MXU
    h3 = jnp.dot(x, w3_ref[...], preferred_element_type=jnp.float32)   # MXU
    gated = (h1 * jax.nn.sigmoid(h1)) * h3                             # VPU + EUP
    contrib = jnp.dot(gated.astype(w2_ref.dtype), w2_ref[...],
                      preferred_element_type=jnp.float32)              # MXU

    @pl.when(j == 0)
    def _first():                      # no separate zero-init pass
        acc_ref[...] = contrib

    @pl.when(j > 0)
    def _rest():
        acc_ref[...] += contrib

    @pl.when(j == pl.num_programs(1) - 1)
    def _finalize():
        o_ref[...] = acc_ref[...].astype(o_ref.dtype)


def ffn_kernel_f32out(x_ref, w1_ref, w3_ref, w2_ref, o_ref):
    # f32-output variant: accumulate straight into the resident output block
    # (the separate f32 scratch would be redundant).
    j = pl.program_id(1)
    x = x_ref[...]
    h1 = jnp.dot(x, w1_ref[...], preferred_element_type=jnp.float32)
    h3 = jnp.dot(x, w3_ref[...], preferred_element_type=jnp.float32)
    gated = (h1 * jax.nn.sigmoid(h1)) * h3
    contrib = jnp.dot(gated.astype(w2_ref.dtype), w2_ref[...],
                      preferred_element_type=jnp.float32)

    @pl.when(j == 0)
    def _first():
        o_ref[...] = contrib

    @pl.when(j > 0)
    def _rest():
        o_ref[...] += contrib


# ----------------------------------------------------------------------------
# Generation-aware configuration
# ----------------------------------------------------------------------------
def _tpu_generation_and_vmem():
    """Best-effort (generation string, physical VMEM bytes)."""
    kind = ""
    vmem = None
    try:
        kind = jax.devices()[0].device_kind.lower()
    except Exception:
        pass
    try:
        vmem = int(pltpu.get_tpu_info().vmem_capacity_bytes)
    except Exception:
        vmem = None
    if vmem is None:
        # Conservative fallback: assume the smallest VMEM (v7x: 64 MiB)
        # unless the device kind clearly says v5/v6 (128 MiB).
        vmem = 128 * _MiB if ("v5" in kind or "v6" in kind) else 64 * _MiB
    return kind, vmem


def make_ffn_config(dim, inter, *, out_dtype=jnp.bfloat16,
                    compute_dtype=jnp.bfloat16):
    """Pick (tm, tn, vmem_limit) for this chip generation and problem size."""
    kind, vmem_cap = _tpu_generation_and_vmem()
    is_v7 = "v7" in kind
    is_v6 = "v6" in kind
    is_v5 = "v5" in kind

    # tm sets the arithmetic intensity on the weight stream (AI ~ tm flops
    # per weight byte); tn only sets the slab width (total weight bytes are
    # unchanged), so keep it small where VMEM is tight.
    if is_v6:
        tm, tn = 1024, 256          # v6e ridge ~650-680 flops/byte, 128 MiB VMEM
    elif is_v7:
        tm, tn = 512, 256           # v7x ridge ~310/TC, only 64 MiB VMEM
    elif is_v5:
        tm, tn = 256, 512           # v5e ridge ~240 flops/byte
    else:
        tm, tn = 512, 256

    # VMEM budget with headroom under the physical capacity.
    vmem_limit = min(int(vmem_cap * 0.82), 100 * _MiB)

    out_bytes = jnp.dtype(out_dtype).itemsize
    act_bytes = jnp.dtype(compute_dtype).itemsize
    acc_bytes = 0 if jnp.dtype(out_dtype) == jnp.dtype(jnp.float32) else 4

    def _est(tm_, tn_):
        x_buf = 2 * tm_ * dim * act_bytes          # x tile, double-buffered
        w_buf = 2 * 3 * dim * tn_ * act_bytes      # W1/W3/W2 slabs, double-buffered
        o_buf = 2 * tm_ * dim * out_bytes          # output tile, double-buffered
        acc = tm_ * dim * acc_bytes                # f32 accumulator scratch
        tmp = 3 * tm_ * tn_ * 4 + 2 * _MiB         # h1/h3/gated + internal scratch
        return x_buf + w_buf + o_buf + acc + tmp

    # Shrink slabs first (costs nothing on the roofline), then tm.
    while _est(tm, tn) > vmem_limit and tn > 128:
        tn //= 2
    while _est(tm, tn) > vmem_limit and tm > 128:
        tm //= 2

    return dict(dim=dim, inter=inter, tm=tm, tn=tn, vmem_limit=vmem_limit,
                is_v7=is_v7, is_v6=is_v6, is_v5=is_v5,
                out_dtype=out_dtype, compute_dtype=compute_dtype)


def prepare_ffn_weights(w1, w2, w3, cfg):
    """One-time weight prep (hoist out of the hot path): transpose torch
    (out, in) -> (in, out), cast to the MXU dtype, pad inter to a multiple
    of tn.  Padding is exact for SwiGLU (silu(0)*0 = 0, zero W2 rows add 0)."""
    tn = cfg["tn"]
    dt = cfg["compute_dtype"]
    inter = w1.shape[0]
    n_pad = _round_up(inter, tn)
    w1_t = jnp.asarray(w1, dt).T            # (dim, inter)
    w3_t = jnp.asarray(w3, dt).T            # (dim, inter)
    w2_t = jnp.asarray(w2, dt).T            # (inter, dim)
    if n_pad != inter:
        w1_t = jnp.pad(w1_t, ((0, 0), (0, n_pad - inter)))
        w3_t = jnp.pad(w3_t, ((0, 0), (0, n_pad - inter)))
        w2_t = jnp.pad(w2_t, ((0, n_pad - inter), (0, 0)))
    return w1_t, w3_t, w2_t


# ----------------------------------------------------------------------------
# Forward
# ----------------------------------------------------------------------------
def feed_forward(x, w1_t, w3_t, w2_t, cfg, *, weight_buffer_count=2):
    """SwiGLU FFN:  W2( silu(x @ W1^T) * (x @ W3^T) ).

    x     : [M, dim]         tokens-major activations (any float dtype)
    w1_t  : [dim, inter_pad] prepared by prepare_ffn_weights
    w3_t  : [dim, inter_pad]
    w2_t  : [inter_pad, dim]
    """
    M, dim = x.shape
    n_pad = w1_t.shape[1]
    tn = cfg["tn"]
    compute_dtype = cfg["compute_dtype"]
    out_dtype = cfg["out_dtype"]
    f32_out = jnp.dtype(out_dtype) == jnp.dtype(jnp.float32)

    # Clamp tm to the problem; keep bf16-friendly sublane alignment.
    tm = min(cfg["tm"], _round_up(M, 16))
    # v7x: make sure the parallel M axis has >=2 tiles when there is enough
    # work so both TensorCores are used.
    if cfg["is_v7"] and M >= 256:
        tm = min(tm, _round_up((M + 1) // 2, 128))

    m_pad = _round_up(M, tm)

    # Per-call activation cast / pad only (weights were prepared once).
    xb = x.astype(compute_dtype)
    if m_pad != M:
        xb = jnp.pad(xb, ((0, m_pad - M), (0, 0)))

    grid = (m_pad // tm, n_pad // tn)

    act_bytes = jnp.dtype(compute_dtype).itemsize
    w_bytes = (w1_t.size + w3_t.size + w2_t.size) * act_bytes
    cost = pl.CostEstimate(
        flops=6 * M * dim * n_pad,                       # 3 matmuls
        transcendentals=M * n_pad,                       # sigmoid in silu
        bytes_accessed=(xb.size * act_bytes
                        + w_bytes * grid[0]              # weights re-streamed per M tile
                        + m_pad * dim * jnp.dtype(out_dtype).itemsize),
    )

    # Optional deeper weight-slab pipelining (useful on v5e decode shapes).
    w_kwargs = {}
    if weight_buffer_count != 2:
        w_kwargs = dict(pipeline_mode=pl.Buffered(weight_buffer_count))

    kernel = ffn_kernel_f32out if f32_out else ffn_kernel
    scratch = [] if f32_out else [pltpu.VMEM((tm, dim), jnp.float32)]

    out = pl.pallas_call(
        kernel,
        out_shape=jax.ShapeDtypeStruct((m_pad, dim), out_dtype),
        grid_spec=pltpu.PrefetchScalarGridSpec(
            num_scalar_prefetch=0,
            grid=grid,                                   # (M tiles, inter slabs), reduction last
            in_specs=[
                pl.BlockSpec((tm, dim), lambda i, j: (i, 0)),             # x (no re-DMA over j)
                pl.BlockSpec((dim, tn), lambda i, j: (0, j), **w_kwargs),  # W1^T slab
                pl.BlockSpec((dim, tn), lambda i, j: (0, j), **w_kwargs),  # W3^T slab
                pl.BlockSpec((tn, dim), lambda i, j: (j, 0), **w_kwargs),  # W2^T slab
            ],
            out_specs=pl.BlockSpec((tm, dim), lambda i, j: (i, 0)),
            scratch_shapes=scratch,
        ),
        compiler_params=pltpu.CompilerParams(
            dimension_semantics=("parallel", "arbitrary"),
            vmem_limit_bytes=cfg["vmem_limit"],
        ),
        cost_estimate=cost,
    )(xb, w1_t, w3_t, w2_t)

    return out[:M] if m_pad != M else out


def init_linear_weight(key, out_features, in_features, dtype=jnp.float32):
    # matches nn.Linear's scale: U(-1/sqrt(fan_in), 1/sqrt(fan_in))
    bound = 1.0 / (in_features ** 0.5)
    return jax.random.uniform(key, (out_features, in_features),
                              dtype=dtype, minval=-bound, maxval=bound)


if __name__ == "__main__":
    # Small config consistent with ModelArgs semantics (dim, intermediate_size).
    batch, seq = 2, 8
    dim, inter = 256, 512

    key = jax.random.PRNGKey(0)
    kx, k1, k2, k3 = jax.random.split(key, 4)

    x = jax.random.normal(kx, (batch, seq, dim), dtype=jnp.float32)

    # torch layout: (out_features, in_features)
    w1 = init_linear_weight(k1, inter, dim)   # nn.Linear(dim, inter)
    w3 = init_linear_weight(k3, inter, dim)   # nn.Linear(dim, inter)
    w2 = init_linear_weight(k2, dim, inter)   # nn.Linear(inter, dim)

    # One-time config + weight prep (out of the hot path).
    cfg = make_ffn_config(dim, inter, out_dtype=jnp.bfloat16)
    w1_t, w3_t, w2_t = prepare_ffn_weights(w1, w2, w3, cfg)

    # Flatten tokens and run the kernel.
    x2d = x.reshape(batch * seq, dim)
    out2d = feed_forward(x2d, w1_t, w3_t, w2_t, cfg)
    out = out2d.reshape(batch, seq, dim)
    jax.block_until_ready(out)

    # Pure-JAX reference with matching numerics (bf16 feeds, f32 accumulation).
    xb = x.astype(jnp.bfloat16)
    w1b, w3b, w2b = (w.astype(jnp.bfloat16) for w in (w1, w3, w2))
    h1 = jnp.dot(xb, w1b.T, preferred_element_type=jnp.float32)
    h3 = jnp.dot(xb, w3b.T, preferred_element_type=jnp.float32)
    gated = (h1 * jax.nn.sigmoid(h1) * h3).astype(jnp.bfloat16)
    ref = jnp.dot(gated, w2b.T, preferred_element_type=jnp.float32)

    assert jnp.allclose(out.astype(jnp.float32), ref, atol=2e-2, rtol=2e-2), \
        "mismatch vs reference"
    print("KERNEL_OK")
</pallas_src>

<mosaic_0001>
module attributes {stable_mosaic.version = 11 : i64} {
  func.func @ffn_kernel(%arg0: i32, %arg1: i32, %arg2: memref<16x256xbf16, #tpu.memory_space<vmem>>, %arg3: memref<256x256xbf16, #tpu.memory_space<vmem>>, %arg4: memref<256x256xbf16, #tpu.memory_space<vmem>>, %arg5: memref<256x256xbf16, #tpu.memory_space<vmem>>, %arg6: memref<16x256xbf16, #tpu.memory_space<vmem>>, %arg7: memref<16x256xf32, #tpu.memory_space<vmem>>) attributes {dimension_semantics = [#tpu.dimension_semantics<parallel>, #tpu.dimension_semantics<arbitrary>], iteration_bounds = array<i64: 1, 2>, scalar_prefetch = 0 : i64, scratch_operands = 1 : i64, tpu.core_type = #tpu.core_type<tc>, window_params = [{transform_indices = @transform_0, window_bounds = array<i64: 16, 256>}, {transform_indices = @transform_1, window_bounds = array<i64: 256, 256>}, {transform_indices = @transform_2, window_bounds = array<i64: 256, 256>}, {transform_indices = @transform_3, window_bounds = array<i64: 256, 256>}, {transform_indices = @transform_4, window_bounds = array<i64: 16, 256>}]} {
    %c0 = arith.constant 0 : index
    %c0_0 = arith.constant 0 : index
    %0 = vector.load %arg2[%c0, %c0_0] : memref<16x256xbf16, #tpu.memory_space<vmem>>, vector<16x256xbf16>
    %c0_1 = arith.constant 0 : index
    %c0_2 = arith.constant 0 : index
    %1 = vector.load %arg3[%c0_1, %c0_2] : memref<256x256xbf16, #tpu.memory_space<vmem>>, vector<256x256xbf16>
    %cst = arith.constant dense<0.000000e+00> : vector<16x256xf32>
    %2 = tpu.matmul %0, %1, %cst {dimension_numbers = #tpu.dot_dimension_numbers<[1], [0], [0], [1], [0, 0, 1, 1], [], []>} : vector<16x256xbf16>, vector<256x256xbf16>, vector<16x256xf32> -> vector<16x256xf32>
    %c0_3 = arith.constant 0 : index
    %c0_4 = arith.constant 0 : index
    %3 = vector.load %arg4[%c0_3, %c0_4] : memref<256x256xbf16, #tpu.memory_space<vmem>>, vector<256x256xbf16>
    %cst_5 = arith.constant dense<0.000000e+00> : vector<16x256xf32>
    %4 = tpu.matmul %0, %3, %cst_5 {dimension_numbers = #tpu.dot_dimension_numbers<[1], [0], [0], [1], [0, 0, 1, 1], [], []>} : vector<16x256xbf16>, vector<256x256xbf16>, vector<16x256xf32> -> vector<16x256xf32>
    %5 = arith.negf %2 : vector<16x256xf32>
    %6 = math.exp %5 : vector<16x256xf32>
    %cst_6 = arith.constant 1.000000e+00 : f32
    %7 = vector.broadcast %cst_6 : f32 to vector<16x256xf32>
    %8 = arith.addf %7, %6 : vector<16x256xf32>
    %9 = arith.divf %7, %8 : vector<16x256xf32>
    %10 = arith.mulf %2, %9 : vector<16x256xf32>
    %11 = arith.mulf %10, %4 : vector<16x256xf32>
    %12 = arith.truncf %11 : vector<16x256xf32> to vector<16x256xbf16>
    %c0_7 = arith.constant 0 : index
    %c0_8 = arith.constant 0 : index
    %13 = vector.load %arg5[%c0_7, %c0_8] : memref<256x256xbf16, #tpu.memory_space<vmem>>, vector<256x256xbf16>
    %cst_9 = arith.constant dense<0.000000e+00> : vector<16x256xf32>
    %14 = tpu.matmul %12, %13, %cst_9 {dimension_numbers = #tpu.dot_dimension_numbers<[1], [0], [0], [1], [0, 0, 1, 1], [], []>} : vector<16x256xbf16>, vector<256x256xbf16>, vector<16x256xf32> -> vector<16x256xf32>
    %c0_i32 = arith.constant 0 : i32
    %15 = arith.cmpi eq, %arg1, %c0_i32 : i32
    %16 = arith.extui %15 : i1 to i32
    %c0_i32_10 = arith.constant 0 : i32
    %17 = arith.cmpi ne, %16, %c0_i32_10 : i32
    scf.if %17 {
      %c0_14 = arith.constant 0 : index
      %c0_15 = arith.constant 0 : index
      %24 = vector.load %arg7[%c0_14, %c0_15] : memref<16x256xf32, #tpu.memory_space<vmem>>, vector<16x256xf32>
      tpu.vector_store %arg7[%c0_14, %c0_15], %14 {strides = array<i32>} : memref<16x256xf32, #tpu.memory_space<vmem>>, vector<16x256xf32>,
    } else {
    }
    %c0_i32_11 = arith.constant 0 : i32
    %18 = arith.cmpi sgt, %arg1, %c0_i32_11 : i32
    %19 = arith.extui %18 : i1 to i32
    %c0_i32_12 = arith.constant 0 : i32
    %20 = arith.cmpi ne, %19, %c0_i32_12 : i32
    scf.if %20 {
      %c0_14 = arith.constant 0 : index
      %c0_15 = arith.constant 0 : index
      %24 = vector.load %arg7[%c0_14, %c0_15] : memref<16x256xf32, #tpu.memory_space<vmem>>, vector<16x256xf32>
      %25 = arith.addf %24, %14 : vector<16x256xf32>
      %c0_16 = arith.constant 0 : index
      %c0_17 = arith.constant 0 : index
      %26 = vector.load %arg7[%c0_16, %c0_17] : memref<16x256xf32, #tpu.memory_space<vmem>>, vector<16x256xf32>
      tpu.vector_store %arg7[%c0_16, %c0_17], %25 {strides = array<i32>} : memref<16x256xf32, #tpu.memory_space<vmem>>, vector<16x256xf32>,
    } else {
    }
    %c1_i32 = arith.constant 1 : i32
    %21 = arith.cmpi eq, %arg1, %c1_i32 : i32
    %22 = arith.extui %21 : i1 to i32
    %c0_i32_13 = arith.constant 0 : i32
    %23 = arith.cmpi ne, %22, %c0_i32_13 : i32
    scf.if %23 {
      %c0_14 = arith.constant 0 : index
      %c0_15 = arith.constant 0 : index
      %24 = vector.load %arg7[%c0_14, %c0_15] : memref<16x256xf32, #tpu.memory_space<vmem>>, vector<16x256xf32>
      %25 = arith.truncf %24 : vector<16x256xf32> to vector<16x256xbf16>
      %c0_16 = arith.constant 0 : index
      %c0_17 = arith.constant 0 : index
      %26 = vector.load %arg6[%c0_16, %c0_17] : memref<16x256xbf16, #tpu.memory_space<vmem>>, vector<16x256xbf16>
      tpu.vector_store %arg6[%c0_16, %c0_17], %25 {strides = array<i32>} : memref<16x256xbf16, #tpu.memory_space<vmem>>, vector<16x256xbf16>,
    } else {
    }
    return
  }
  func.func @transform_0(%arg0: i32, %arg1: i32) -> (i32, i32) {
    %c0_i32 = arith.constant 0 : i32
    %c0_i32_0 = arith.constant 0 : i32
    return %arg0, %c0_i32 : i32, i32
  }
  func.func @transform_1(%arg0: i32, %arg1: i32) -> (i32, i32) {
    %c0_i32 = arith.constant 0 : i32
    %c0_i32_0 = arith.constant 0 : i32
    return %c0_i32, %arg1 : i32, i32
  }
  func.func @transform_2(%arg0: i32, %arg1: i32) -> (i32, i32) {
    %c0_i32 = arith.constant 0 : i32
    %c0_i32_0 = arith.constant 0 : i32
    return %c0_i32, %arg1 : i32, i32
  }
  func.func @transform_3(%arg0: i32, %arg1: i32) -> (i32, i32) {
    %c0_i32 = arith.constant 0 : i32
    %c0_i32_0 = arith.constant 0 : i32
    return %arg1, %c0_i32 : i32, i32
  }
  func.func @transform_4(%arg0: i32, %arg1: i32) -> (i32, i32) {
    %c0_i32 = arith.constant 0 : i32
    %c0_i32_0 = arith.constant 0 : i32
    return %arg0, %c0_i32 : i32, i32
  }
}

</mosaic_0001>

<llo_original>
// kernel: tpu_custom_call.1
$region0: #{tpu_custom_call.1}
  #allocation0 [shape = 'u32[]', space=smem, size = 0x4, offset = 0x4, fixed_abs, tag = 'smem constant byte address 0x4 - core index']
  #allocation1 [shape = 'u32[72,128]{1,0:T(1,128)}', space=vmem, size = 0x9000, scoped, tag = 'internal scratch']
  #allocation2 [shape = 'f32[16,256]{1,0:T(8,128)}', space=vmem, size = 0x4000, scoped, tag = 'scratch operand']
  %s0 = inlined_call_operand.hbm [shape: bf16[16,256], index: 0, kind: input, shape index: {}]
  %s1 = inlined_call_operand.hbm [shape: bf16[256,512], index: 1, kind: input, shape index: {}]
  %s2 = inlined_call_operand.hbm [shape: bf16[256,512], index: 2, kind: input, shape index: {}]
  %s3 = inlined_call_operand.hbm [shape: bf16[512,256], index: 3, kind: input, shape index: {}]
  %s4 = inlined_call_operand.hbm [shape: bf16[16,256], index: 4, kind: output, shape index: {}]
  %s5 = sld [smem:[#allocation0]]
  $region77: #{tpu_custom_call.1} parent=0
    _
  %s7 = ssub.s32 1, %s5
  %s8 = scalar_select 0, %s7, %s5
  $region1: #{tpu_custom_call.1} parent=0
    #allocation3 [shape = 'u8[8192]{0}', space=vmem, size = 0x2000, scoped, tag = 'input window, operand 0, single buffered']
    #allocation4 [shape = 's32[2]{0}', space=sflag, size = 0x8, scoped, tag = 'scoped memory for tpu_custom_call.1']
    #allocation5 [shape = 's32[2]{0}', space=sflag, size = 0x8, scoped, tag = 'scoped memory for tpu_custom_call.1']
    #allocation6 [shape = 'u8[262144]{0}', space=vmem, size = 0x40000, scoped, tag = 'input window, operand 1']
    #allocation7 [shape = 's32[2]{0}', space=sflag, size = 0x8, scoped, tag = 'scoped memory for tpu_custom_call.1']
    #allocation8 [shape = 'u8[262144]{0}', space=vmem, size = 0x40000, scoped, tag = 'input window, operand 2']
    #allocation9 [shape = 'u8[262144]{0}', space=vmem, size = 0x40000, scoped, tag = 'input window, operand 3']
    #allocation10 [shape = 's32[2]{0}', space=sflag, size = 0x8, scoped, tag = 'scoped memory for tpu_custom_call.1']
    #allocation11 [shape = 'u8[8192]{0}', space=vmem, size = 0x2000, scoped, tag = 'output window, operand 0, single buffered']
    %9 = vsyncpa [#allocation4], 0
    %10 = vsyncpa [#allocation7], 0
    %s11 = scalar_lea.sflag [#allocation7], 1
    %12 = vsyncpa %s11, 0
    %13 = vsyncpa [#allocation10], 0
    %s14 = scalar_lea.sflag [#allocation10], 1
    %15 = vsyncpa %s14, 0
    %16 = vsyncpa [#allocation5], 0
    loop: start=0, step=1, limit=4
    $region2: #{tpu_custom_call.1} parent=1 // loop_pre_header
      _
    $region3: #{tpu_custom_call.1} parent=1 // loop_header
      %s18 = sphi 0, %s22
      %p19 = scmp.ge.s32.totalorder %s18, 4
      %s25 = sphi 0, %s37
      %s26 = sphi 0, %s33
      %s27 = sphi 0, %s25
      %s28 = sphi 0, %s26
      %s29 = sphi 0, %s27
      %s30 = sphi 0, %s28
      %s40 = sphi 0, %s42
      %s43 = sphi 0, %s40
      %s44 = sphi 0, %s43
      %s60 = sphi 0, %s44
      %s66 = sphi 0, %s68
      %s69 = sphi 0, %s66
      %s70 = sphi 0, %s69
      %s86 = sphi 0, %s70
      %s92 = sphi 0, %s94
      %s95 = sphi 0, %s92
      %s96 = sphi 0, %s95
      %s112 = sphi 0, %s96
      %s118 = sphi 0, %s120
      %s121 = sphi 0, %s118
      %s122 = sphi 0, %s121
      %s138 = sphi 0, %s122
      %s144 = sphi 0, %s146
      %s147 = sphi 0, %s144
      %s148 = sphi 0, %s147
      %s164 = sphi 0, %s148
    $region4: #{tpu_custom_call.1} parent=1 // loop_header_branch
      %21 = sbr.rel (%p19) target = $region8
    $region5: #{tpu_custom_call.1} parent=1 // loop_body
      %s23 = ssub.s32 %s18, 1
      %s24 = ssub.s32 %s18, 2
      %s31 = sadd.s32 1, %s26
      %p32 = scmp.ge.s32.totalorder %s31, 2
      %s33 = scalar_select %p32, 0, %s31
      %s34 = sadd.s32 1, %s25
      %s35 = scalar_select %p32, %s34, %s25
      %p36 = scmp.ge.s32.totalorder %s35, 1
      %s37 = scalar_select %p36, 0, %s35
      %s38 = ssub.s32 %s25, %s37
      %p39 = scmp.eq.s32.totalorder %s38, 0
      %s41 = sadd.s32 %s40, 1
      %s42 = scalar_select %p39, %s40, %s41
      %p45 = pneg %p39
      %p46 = scmp.eq.s32.totalorder %s18, 1
      %p47 = por %p45, %p46
      %p48 = scmp.ne.s32.totalorder %s40, %s43
      %p49 = scmp.eq.s32.totalorder %s18, 0
      %p50 = por %p48, %p49
      %p51 = scmp.ne.s32.totalorder %s40, %s43
      %p52 = scmp.eq.s32.totalorder %s23, 1
      %p53 = por %p51, %p52
      %p54 = scmp.ne.s32.totalorder %s43, %s44
      %p55 = scmp.eq.s32.totalorder %s23, 0
      %p56 = por %p54, %p55
      %p57 = scmp.ne.s32.totalorder %s43, %s44
      %p58 = scmp.eq.s32.totalorder %s24, 1
      %p59 = por %p57, %p58
      %p61 = scmp.ne.s32.totalorder %s44, %s60
      %p62 = scmp.eq.s32.totalorder %s24, 0
      %p63 = por %p61, %p62
      %s64 = ssub.s32 %s26, %s33
      %p65 = scmp.eq.s32.totalorder %s64, 0
      %s67 = sadd.s32 %s66, 1
      %s68 = scalar_select %p65, %s66, %s67
      %p71 = pneg %p65
      %p72 = scmp.eq.s32.totalorder %s18, 1
      %p73 = por %p71, %p72
      %p74 = scmp.ne.s32.totalorder %s66, %s69
      %p75 = scmp.eq.s32.totalorder %s18, 0
      %p76 = por %p74, %p75
      %p77 = scmp.ne.s32.totalorder %s66, %s69
      %p78 = scmp.eq.s32.totalorder %s23, 1
      %p79 = por %p77, %p78
      %p80 = scmp.ne.s32.totalorder %s69, %s70
      %p81 = scmp.eq.s32.totalorder %s23, 0
      %p82 = por %p80, %p81
      %p83 = scmp.ne.s32.totalorder %s69, %s70
      %p84 = scmp.eq.s32.totalorder %s24, 1
      %p85 = por %p83, %p84
      %p87 = scmp.ne.s32.totalorder %s70, %s86
      %p88 = scmp.eq.s32.totalorder %s24, 0
      %p89 = por %p87, %p88
      %s90 = ssub.s32 %s26, %s33
      %p91 = scmp.eq.s32.totalorder %s90, 0
      %s93 = sadd.s32 %s92, 1
      %s94 = scalar_select %p91, %s92, %s93
      %p97 = pneg %p91
      %p98 = scmp.eq.s32.totalorder %s18, 1
      %p99 = por %p97, %p98
      %p100 = scmp.ne.s32.totalorder %s92, %s95
      %p101 = scmp.eq.s32.totalorder %s18, 0
      %p102 = por %p100, %p101
      %p103 = scmp.ne.s32.totalorder %s92, %s95
      %p104 = scmp.eq.s32.totalorder %s23, 1
      %p105 = por %p103, %p104
      %p106 = scmp.ne.s32.totalorder %s95, %s96
      %p107 = scmp.eq.s32.totalorder %s23, 0
      %p108 = por %p106, %p107
      %p109 = scmp.ne.s32.totalorder %s95, %s96
      %p110 = scmp.eq.s32.totalorder %s24, 1
      %p111 = por %p109, %p110
      %p113 = scmp.ne.s32.totalorder %s96, %s112
      %p114 = scmp.eq.s32.totalorder %s24, 0
      %p115 = por %p113, %p114
      %s116 = ssub.s32 %s26, %s33
      %p117 = scmp.eq.s32.totalorder %s116, 0
      %s119 = sadd.s32 %s118, 1
      %s120 = scalar_select %p117, %s118, %s119
      %p123 = pneg %p117
      %p124 = scmp.eq.s32.totalorder %s18, 1
      %p125 = por %p123, %p124
      %p126 = scmp.ne.s32.totalorder %s118, %s121
      %p127 = scmp.eq.s32.totalorder %s18, 0
      %p128 = por %p126, %p127
      %p129 = scmp.ne.s32.totalorder %s118, %s121
      %p130 = scmp.eq.s32.totalorder %s23, 1
      %p131 = por %p129, %p130
      %p132 = scmp.ne.s32.totalorder %s121, %s122
      %p133 = scmp.eq.s32.totalorder %s23, 0
      %p134 = por %p132, %p133
      %p135 = scmp.ne.s32.totalorder %s121, %s122
      %p136 = scmp.eq.s32.totalorder %s24, 1
      %p137 = por %p135, %p136
      %p139 = scmp.ne.s32.totalorder %s122, %s138
      %p140 = scmp.eq.s32.totalorder %s24, 0
      %p141 = por %p139, %p140
      %s142 = ssub.s32 %s25, %s37
      %p143 = scmp.eq.s32.totalorder %s142, 0
      %s145 = sadd.s32 %s144, 1
      %s146 = scalar_select %p143, %s144, %s145
      %p149 = pneg %p143
      %p150 = scmp.eq.s32.totalorder %s18, 1
      %p151 = por %p149, %p150
      %p152 = scmp.ne.s32.totalorder %s144, %s147
      %p153 = scmp.eq.s32.totalorder %s18, 0
      %p154 = por %p152, %p153
      %p155 = scmp.ne.s32.totalorder %s144, %s147
      %p156 = scmp.eq.s32.totalorder %s23, 1
      %p157 = por %p155, %p156
      %p158 = scmp.ne.s32.totalorder %s147, %s148
      %p159 = scmp.eq.s32.totalorder %s23, 0
      %p160 = por %p158, %p159
      %p161 = scmp.ne.s32.totalorder %s147, %s148
      %p162 = scmp.eq.s32.totalorder %s24, 1
      %p163 = por %p161, %p162
      %p165 = scmp.ne.s32.totalorder %s148, %s164
      %p166 = scmp.eq.s32.totalorder %s24, 0
      %p167 = por %p165, %p166
      %p168 = scmp.le.s32.totalorder 1, %s18
      %p169 = scmp.lt.s32.totalorder %s18, 3
      %p170 = pnand %p168, %p169
      %p171 = pneg %p170
      // Predicated region
      $region9: #{tpu_custom_call.1} parent=5 // pred_check
        _
      $region10: #{tpu_custom_call.1} parent=5 // pred_check_branch
        %173 = sbr.rel (%p170) target = $region12
      $region11: #{tpu_custom_call.1} parent=5 // pred_region
        %s174 = ssub.s32 %s18, 1
        // Predicated region
        $region13: #{tpu_custom_call.1} parent=11 // pred_check
          %p175 = pneg %p56
        $region14: #{tpu_custom_call.1} parent=11 // pred_check_branch
          %177 = sbr.rel (%p175) target = $region16
        $region15: #{tpu_custom_call.1} parent=11 // pred_region
          %s178 = smul.u32 2, %s27
          %180 = vsyncadd [#allocation4], 0
          %s181 = smul.addr %s178, 2
          %s182 = smul.addr %s181, 4
          %s183 = scalar_lea.hbm %s0, %s182
          %s184 = sshll.u32 %s183, 4
          %s185 = int_to_ptr.hbm [resolvable:$true] %s184
          %s186 = sshll.u32 [#allocation3], 4
          %s187 = int_to_ptr.vmem [resolvable:$true] %s186
          %192 = dma.hbm_to_vmem [thread:$0]  %s185, 256, %s187, [#allocation4], 128, 128, 8
        $region16: #{tpu_custom_call.1} parent=11 // pred_fallthru
          _
      $region12: #{tpu_custom_call.1} parent=5 // pred_fallthru
        _
      %p193 = scmp.lt.s32.totalorder %s18, 2
      // Predicated region
      $region17: #{tpu_custom_call.1} parent=5 // pred_check
        %p194 = pneg %p193
      $region18: #{tpu_custom_call.1} parent=5 // pred_check_branch
        %196 = sbr.rel (%p194) target = $region20
      $region19: #{tpu_custom_call.1} parent=5 // pred_region
        // Predicated region
        $region21: #{tpu_custom_call.1} parent=19 // pred_check
          %p197 = pneg %p76
        $region22: #{tpu_custom_call.1} parent=19 // pred_check_branch
          %199 = sbr.rel (%p197) target = $region24
        $region23: #{tpu_custom_call.1} parent=19 // pred_region
          %s200 = sand.u32 %s18, 1
          %s201 = scalar_lea.sflag [#allocation7], %s200
          %s202 = sand.u32 %s66, 1
          %s203 = smul.addr %s202, 256
          %s204 = scalar_lea.vmem [#allocation6], %s203
          %s205 = smul.u32 2, %s26
          %207 = vsyncadd %s201, 0
          %s208 = smul.addr %s205, 4
          %s209 = scalar_lea.hbm %s1, %s208
          %s210 = sshll.u32 %s209, 4
          %s211 = int_to_ptr.hbm [resolvable:$true] %s210
          %s212 = sshll.u32 %s204, 4
          %s213 = int_to_ptr.vmem [resolvable:$true] %s212
          %218 = dma.hbm_to_vmem [thread:$0]  %s211, 4096, %s213, %s201, 256, 128, 8
        $region24: #{tpu_custom_call.1} parent=19 // pred_fallthru
          _
        // Predicated region
        $region25: #{tpu_custom_call.1} parent=19 // pred_check
          %p219 = pneg %p102
        $region26: #{tpu_custom_call.1} parent=19 // pred_check_branch
          %221 = sbr.rel (%p219) target = $region28
        $region27: #{tpu_custom_call.1} parent=19 // pred_region
          %s222 = sand.u32 %s18, 1
          %s223 = scalar_lea.sflag [#allocation7], %s222
          %s224 = sand.u32 %s92, 1
          %s225 = smul.addr %s224, 256
          %s226 = scalar_lea.vmem [#allocation8], %s225
          %s227 = smul.u32 2, %s26
          %229 = vsyncadd %s223, 0
          %s230 = smul.addr %s227, 4
          %s231 = scalar_lea.hbm %s2, %s230
          %s232 = sshll.u32 %s231, 4
          %s233 = int_to_ptr.hbm [resolvable:$true] %s232
          %s234 = sshll.u32 %s226, 4
          %s235 = int_to_ptr.vmem [resolvable:$true] %s234
          %240 = dma.hbm_to_vmem [thread:$0]  %s233, 4096, %s235, %s223, 256, 128, 8
        $region28: #{tpu_custom_call.1} parent=19 // pred_fallthru
          _
        // Predicated region
        $region29: #{tpu_custom_call.1} parent=19 // pred_check
          %p241 = pneg %p128
        $region30: #{tpu_custom_call.1} parent=19 // pred_check_branch
          %243 = sbr.rel (%p241) target = $region32
        $region31: #{tpu_custom_call.1} parent=19 // pred_region
          %s244 = sand.u32 %s118, 1
          %s245 = scalar_lea.sflag [#allocation10], %s244
          %s246 = sand.u32 %s118, 1
          %s247 = smul.addr %s246, 256
          %s248 = scalar_lea.vmem [#allocation9], %s247
          %s249 = smul.u32 32, %s26
          %251 = vsyncadd %s245, 0
          %s252 = smul.addr %s249, 2
          %s253 = smul.addr %s252, 4
          %s254 = scalar_lea.hbm %s3, %s253
          %s255 = sshll.u32 %s254, 4
          %s256 = int_to_ptr.hbm [resolvable:$true] %s255
          %s257 = sshll.u32 %s248, 4
          %s258 = int_to_ptr.vmem [resolvable:$true] %s257
          %263 = dma.hbm_to_vmem [thread:$0]  %s256, 4096, %s258, %s245, 128, 128, 8
        $region32: #{tpu_custom_call.1} parent=19 // pred_fallthru
          _
      $region20: #{tpu_custom_call.1} parent=5 // pred_fallthru
        _
      %p264 = scmp.le.s32.totalorder 1, %s18
      %p265 = scmp.lt.s32.totalorder %s18, 3
      %p266 = pnand %p264, %p265
      %p267 = pneg %p266
      // Predicated region
      $region33: #{tpu_custom_call.1} parent=5 // pred_check
        _
      $region34: #{tpu_custom_call.1} parent=5 // pred_check_branch
        %269 = sbr.rel (%p266) target = $region36
      $region35: #{tpu_custom_call.1} parent=5 // pred_region
        %s270 = ssub.s32 %s18, 1
        // Predicated region
        $region37: #{tpu_custom_call.1} parent=35 // pred_check
          %p271 = pneg %p56
        $region38: #{tpu_custom_call.1} parent=35 // pred_check_branch
          %273 = sbr.rel (%p271) target = $region40
        $region39: #{tpu_custom_call.1} parent=35 // pred_region
          %275 = dma.done [#allocation4], 256
        $region40: #{tpu_custom_call.1} parent=35 // pred_fallthru
          _
        %s276 = sand.u32 %s23, 1
        %s277 = scalar_lea.sflag [#allocation7], %s276
        %s278 = sand.u32 %s69, 1
        %s279 = smul.addr %s278, 256
        %s280 = scalar_lea.vmem [#allocation6], %s279
        // Predicated region
        $region41: #{tpu_custom_call.1} parent=35 // pred_check
          %p281 = pneg %p82
        $region42: #{tpu_custom_call.1} parent=35 // pred_check_branch
          %283 = sbr.rel (%p281) target = $region44
        $region43: #{tpu_custom_call.1} parent=35 // pred_region
          %285 = dma.done %s277, 4096
        $region44: #{tpu_custom_call.1} parent=35 // pred_fallthru
          _
        %s286 = sand.u32 %s23, 1
        %s287 = scalar_lea.sflag [#allocation7], %s286
        %s288 = sand.u32 %s95, 1
        %s289 = smul.addr %s288, 256
        %s290 = scalar_lea.vmem [#allocation8], %s289
        // Predicated region
        $region45: #{tpu_custom_call.1} parent=35 // pred_check
          %p291 = pneg %p108
        $region46: #{tpu_custom_call.1} parent=35 // pred_check_branch
          %293 = sbr.rel (%p291) target = $region48
        $region47: #{tpu_custom_call.1} parent=35 // pred_region
          %295 = dma.done %s287, 4096
        $region48: #{tpu_custom_call.1} parent=35 // pred_fallthru
          _
        %s296 = sand.u32 %s121, 1
        %s297 = scalar_lea.sflag [#allocation10], %s296
        %s298 = sand.u32 %s121, 1
        %s299 = smul.addr %s298, 256
        %s300 = scalar_lea.vmem [#allocation9], %s299
        // Predicated region
        $region49: #{tpu_custom_call.1} parent=35 // pred_check
          %p301 = pneg %p134
        $region50: #{tpu_custom_call.1} parent=35 // pred_check_branch
          %303 = sbr.rel (%p301) target = $region52
        $region51: #{tpu_custom_call.1} parent=35 // pred_region
          %305 = dma.done %s297, 4096
        $region52: #{tpu_custom_call.1} parent=35 // pred_fallthru
          _
        %p306 = pneg %p56
        %p307 = pneg %p53
        %s308 = sand.u32 %s23, 1
        %s309 = scalar_lea.sflag [#allocation7], %s308
        %s310 = sand.u32 %s69, 1
        %s311 = smul.addr %s310, 256
        %s312 = scalar_lea.vmem [#allocation6], %s311
        %p313 = pneg %p82
        %p314 = pneg %p79
        %s315 = sand.u32 %s23, 1
        %s316 = scalar_lea.sflag [#allocation7], %s315
        %s317 = sand.u32 %s95, 1
        %s318 = smul.addr %s317, 256
        %s319 = scalar_lea.vmem [#allocation8], %s318
        %p320 = pneg %p108
        %p321 = pneg %p105
        %s322 = sand.u32 %s121, 1
        %s323 = scalar_lea.sflag [#allocation10], %s322
        %s324 = sand.u32 %s121, 1
        %s325 = smul.addr %s324, 256
        %s326 = scalar_lea.vmem [#allocation9], %s325
        %p327 = pneg %p134
        %p328 = pneg %p131
        %p329 = pneg %p160
        %p330 = pneg %p157
        %s331 = smul.u32 2, %s27
        %s332 = smul.u32 2, %s28
        %s333 = smul.u32 2, %s28
        %s334 = smul.u32 32, %s28
        %s335 = smul.u32 2, %s27
        %v336 = vld [vmem:[#allocation3] sm:$0xff]
        %v337 = vld [vmem:[#allocation3 + $0x8] sm:$0xff]
        %v338 = vld [vmem:[%s280] sm:$0xff]
        %v339 = vld [vmem:[%s280 + $0x8] sm:$0xff]
        %v340 = vld [vmem:[%s280 + $0x10] sm:$0xff]
        %v341 = vld [vmem:[%s280 + $0x18] sm:$0xff]
        %v342 = vld [vmem:[%s280 + $0x20] sm:$0xff]
        %v343 = vld [vmem:[%s280 + $0x28] sm:$0xff]
        %v344 = vld [vmem:[%s280 + $0x30] sm:$0xff]
        %v345 = vld [vmem:[%s280 + $0x38] sm:$0xff]
        %v346 = vld [vmem:[%s280 + $0x40] sm:$0xff]
        %v347 = vld [vmem:[%s280 + $0x48] sm:$0xff]
        %v348 = vld [vmem:[%s280 + $0x50] sm:$0xff]
        %v349 = vld [vmem:[%s280 + $0x58] sm:$0xff]
        %v350 = vld [vmem:[%s280 + $0x60] sm:$0xff]
        %v351 = vld [vmem:[%s280 + $0x68] sm:$0xff]
        %v352 = vld [vmem:[%s280 + $0x70] sm:$0xff]
        %v353 = vld [vmem:[%s280 + $0x78] sm:$0xff]
        %v354 = vld [vmem:[%s280 + $0x80] sm:$0xff]
        %v355 = vld [vmem:[%s280 + $0x88] sm:$0xff]
        %v356 = vld [vmem:[%s280 + $0x90] sm:$0xff]
        %v357 = vld [vmem:[%s280 + $0x98] sm:$0xff]
        %v358 = vld [vmem:[%s280 + $0xa0] sm:$0xff]
        %v359 = vld [vmem:[%s280 + $0xa8] sm:$0xff]
        %v360 = vld [vmem:[%s280 + $0xb0] sm:$0xff]
        %v361 = vld [vmem:[%s280 + $0xb8] sm:$0xff]
        %v362 = vld [vmem:[%s280 + $0xc0] sm:$0xff]
        %v363 = vld [vmem:[%s280 + $0xc8] sm:$0xff]
        %v364 = vld [vmem:[%s280 + $0xd0] sm:$0xff]
        %v365 = vld [vmem:[%s280 + $0xd8] sm:$0xff]
        %v366 = vld [vmem:[%s280 + $0xe0] sm:$0xff]
        %v367 = vld [vmem:[%s280 + $0xe8] sm:$0xff]
        %v368 = vld [vmem:[%s280 + $0xf0] sm:$0xff]
        %v369 = vld [vmem:[%s280 + $0xf8] sm:$0xff]
        %v372 = vunpack.c.l.b16 %v336
        %v373 = vunpack.c.h.b16 %v336
        %v374 = vunpack.c.l.b16 %v337
        %v375 = vunpack.c.h.b16 %v337
        %v376 = vpack.c.b16 %v374, %v372
        %v377 = vpack.c.b16 %v375, %v373
        %v412 = vunpack.c.l.b16 %v338
        %v413 = vunpack.c.h.b16 %v338
        %v414 = vunpack.c.l.b16 %v339
        %v415 = vunpack.c.h.b16 %v339
        %v416 = vunpack.c.l.b16 %v340
        %v417 = vunpack.c.h.b16 %v340
        %v418 = vunpack.c.l.b16 %v341
        %v419 = vunpack.c.h.b16 %v341
        %v420 = vunpack.c.l.b16 %v342
        %v421 = vunpack.c.h.b16 %v342
        %v422 = vunpack.c.l.b16 %v343
        %v423 = vunpack.c.h.b16 %v343
        %v424 = vunpack.c.l.b16 %v344
        %v425 = vunpack.c.h.b16 %v344
        %v426 = vunpack.c.l.b16 %v345
        %v427 = vunpack.c.h.b16 %v345
        %v428 = vunpack.c.l.b16 %v346
        %v429 = vunpack.c.h.b16 %v346
        %v430 = vunpack.c.l.b16 %v347
        %v431 = vunpack.c.h.b16 %v347
        %v432 = vunpack.c.l.b16 %v348
        %v433 = vunpack.c.h.b16 %v348
        %v434 = vunpack.c.l.b16 %v349
        %v435 = vunpack.c.h.b16 %v349
        %v436 = vunpack.c.l.b16 %v350
        %v437 = vunpack.c.h.b16 %v350
        %v438 = vunpack.c.l.b16 %v351
        %v439 = vunpack.c.h.b16 %v351
        %v440 = vunpack.c.l.b16 %v352
        %v441 = vunpack.c.h.b16 %v352
        %v442 = vunpack.c.l.b16 %v353
        %v443 = vunpack.c.h.b16 %v353
        %v444 = vunpack.c.l.b16 %v354
        %v445 = vunpack.c.h.b16 %v354
        %v446 = vunpack.c.l.b16 %v355
        %v447 = vunpack.c.h.b16 %v355
        %v448 = vunpack.c.l.b16 %v356
        %v449 = vunpack.c.h.b16 %v356
        %v450 = vunpack.c.l.b16 %v357
        %v451 = vunpack.c.h.b16 %v357
        %v452 = vunpack.c.l.b16 %v358
        %v453 = vunpack.c.h.b16 %v358
        %v454 = vunpack.c.l.b16 %v359
        %v455 = vunpack.c.h.b16 %v359
        %v456 = vunpack.c.l.b16 %v360
        %v457 = vunpack.c.h.b16 %v360
        %v458 = vunpack.c.l.b16 %v361
        %v459 = vunpack.c.h.b16 %v361
        %v460 = vunpack.c.l.b16 %v362
        %v461 = vunpack.c.h.b16 %v362
        %v462 = vunpack.c.l.b16 %v363
        %v463 = vunpack.c.h.b16 %v363
        %v464 = vunpack.c.l.b16 %v364
        %v465 = vunpack.c.h.b16 %v364
        %v466 = vunpack.c.l.b16 %v365
        %v467 = vunpack.c.h.b16 %v365
        %v468 = vunpack.c.l.b16 %v366
        %v469 = vunpack.c.h.b16 %v366
        %v470 = vunpack.c.l.b16 %v367
        %v471 = vunpack.c.h.b16 %v367
        %v472 = vunpack.c.l.b16 %v368
        %v473 = vunpack.c.h.b16 %v368
        %v474 = vunpack.c.l.b16 %v369
        %v475 = vunpack.c.h.b16 %v369
        %v476 = vpack.c.b16 %v414, %v412
        %v477 = vpack.c.b16 %v415, %v413
        %v478 = vpack.c.b16 %v418, %v416
        %v479 = vpack.c.b16 %v419, %v417
        %v480 = vpack.c.b16 %v422, %v420
        %v481 = vpack.c.b16 %v423, %v421
        %v482 = vpack.c.b16 %v426, %v424
        %v483 = vpack.c.b16 %v427, %v425
        %v484 = vpack.c.b16 %v430, %v428
        %v485 = vpack.c.b16 %v431, %v429
        %v486 = vpack.c.b16 %v434, %v432
        %v487 = vpack.c.b16 %v435, %v433
        %v488 = vpack.c.b16 %v438, %v436
        %v489 = vpack.c.b16 %v439, %v437
        %v490 = vpack.c.b16 %v442, %v440
        %v491 = vpack.c.b16 %v443, %v441
        %v492 = vpack.c.b16 %v446, %v444
        %v493 = vpack.c.b16 %v447, %v445
        %v494 = vpack.c.b16 %v450, %v448
        %v495 = vpack.c.b16 %v451, %v449
        %v496 = vpack.c.b16 %v454, %v452
        %v497 = vpack.c.b16 %v455, %v453
        %v498 = vpack.c.b16 %v458, %v456
        %v499 = vpack.c.b16 %v459, %v457
        %v500 = vpack.c.b16 %v462, %v460
        %v501 = vpack.c.b16 %v463, %v461
        %v502 = vpack.c.b16 %v466, %v464
        %v503 = vpack.c.b16 %v467, %v465
        %v504 = vpack.c.b16 %v470, %v468
        %v505 = vpack.c.b16 %v471, %v469
        %v506 = vpack.c.b16 %v474, %v472
        %v507 = vpack.c.b16 %v475, %v473
        %540 = vmatpush.bf16.msra.mxu0 %v490
        %541 = vmatpush.bf16.msra.mxu0 %v488
        %542 = vmatpush.bf16.msra.mxu0 %v486
        %543 = vmatpush.bf16.msra.mxu0 %v484
        %544 = vmatpush.bf16.msra.mxu0 %v482
        %545 = vmatpush.bf16.msra.mxu0 %v480
        %546 = vmatpush.bf16.msra.mxu0 %v478
        %547 = vmatpush.bf16.msra.mxu0 %v476
        %548 = vmatmul.bf16.gmra.mxu0 %v376
        %v549 = vpop.f32.mrf.mxu0
        %v550 = vadd.f32 0.0, %v549
        %v551 = vpop.f32.mrf.mxu0
        %v552 = vadd.f32 0.0, %v551
        %553 = vdwg.mxu0
        %554 = vmatpush.bf16.msra.mxu0 %v506
        %555 = vmatpush.bf16.msra.mxu0 %v504
        %556 = vmatpush.bf16.msra.mxu0 %v502
        %557 = vmatpush.bf16.msra.mxu0 %v500
        %558 = vmatpush.bf16.msra.mxu0 %v498
        %559 = vmatpush.bf16.msra.mxu0 %v496
        %560 = vmatpush.bf16.msra.mxu0 %v494
        %561 = vmatpush.bf16.msra.mxu0 %v492
        %562 = vmatmul.bf16.gmra.mxu0 %v377
        %v563 = vpop.f32.mrf.mxu0
        %v564 = vadd.f32 %v550, %v563
        %v565 = vpop.f32.mrf.mxu0
        %v566 = vadd.f32 %v552, %v565
        %567 = vdwg.mxu0
        %568 = vmatpush.bf16.msra.mxu0 %v491
        %569 = vmatpush.bf16.msra.mxu0 %v489
        %570 = vmatpush.bf16.msra.mxu0 %v487
        %571 = vmatpush.bf16.msra.mxu0 %v485
        %572 = vmatpush.bf16.msra.mxu0 %v483
        %573 = vmatpush.bf16.msra.mxu0 %v481
        %574 = vmatpush.bf16.msra.mxu0 %v479
        %575 = vmatpush.bf16.msra.mxu0 %v477
        %576 = vmatmul.bf16.gmra.mxu0 %v376
        %v577 = vpop.f32.mrf.mxu0
        %v578 = vadd.f32 0.0, %v577
        %v579 = vpop.f32.mrf.mxu0
        %v580 = vadd.f32 0.0, %v579
        %581 = vdwg.mxu0
        %582 = vmatpush.bf16.msra.mxu0 %v507
        %583 = vmatpush.bf16.msra.mxu0 %v505
        %584 = vmatpush.bf16.msra.mxu0 %v503
        %585 = vmatpush.bf16.msra.mxu0 %v501
        %586 = vmatpush.bf16.msra.mxu0 %v499
        %587 = vmatpush.bf16.msra.mxu0 %v497
        %588 = vmatpush.bf16.msra.mxu0 %v495
        %589 = vmatpush.bf16.msra.mxu0 %v493
        %590 = vmatmul.bf16.gmra.mxu0 %v377
        %v591 = vpop.f32.mrf.mxu0
        %v592 = vadd.f32 %v578, %v591
        %v593 = vpop.f32.mrf.mxu0
        %v594 = vadd.f32 %v580, %v593
        %595 = vdwg.mxu0
        %v596 = vld [vmem:[%s290] sm:$0xff]
        %v597 = vld [vmem:[%s290 + $0x8] sm:$0xff]
        %v598 = vld [vmem:[%s290 + $0x10] sm:$0xff]
        %v599 = vld [vmem:[%s290 + $0x18] sm:$0xff]
        %v600 = vld [vmem:[%s290 + $0x20] sm:$0xff]
        %v601 = vld [vmem:[%s290 + $0x28] sm:$0xff]
        %v602 = vld [vmem:[%s290 + $0x30] sm:$0xff]
        %v603 = vld [vmem:[%s290 + $0x38] sm:$0xff]
        %v604 = vld [vmem:[%s290 + $0x40] sm:$0xff]
        %v605 = vld [vmem:[%s290 + $0x48] sm:$0xff]
        %v606 = vld [vmem:[%s290 + $0x50] sm:$0xff]
        %v607 = vld [vmem:[%s290 + $0x58] sm:$0xff]
        %v608 = vld [vmem:[%s290 + $0x60] sm:$0xff]
        %v609 = vld [vmem:[%s290 + $0x68] sm:$0xff]
        %v610 = vld [vmem:[%s290 + $0x70] sm:$0xff]
        %v611 = vld [vmem:[%s290 + $0x78] sm:$0xff]
        %v612 = vld [vmem:[%s290 + $0x80] sm:$0xff]
        %v613 = vld [vmem:[%s290 + $0x88] sm:$0xff]
        %v614 = vld [vmem:[%s290 + $0x90] sm:$0xff]
        %v615 = vld [vmem:[%s290 + $0x98] sm:$0xff]
        %v616 = vld [vmem:[%s290 + $0xa0] sm:$0xff]
        %v617 = vld [vmem:[%s290 + $0xa8] sm:$0xff]
        %v618 = vld [vmem:[%s290 + $0xb0] sm:$0xff]
        %v619 = vld [vmem:[%s290 + $0xb8] sm:$0xff]
        %v620 = vld [vmem:[%s290 + $0xc0] sm:$0xff]
        %v621 = vld [vmem:[%s290 + $0xc8] sm:$0xff]
        %v622 = vld [vmem:[%s290 + $0xd0] sm:$0xff]
        %v623 = vld [vmem:[%s290 + $0xd8] sm:$0xff]
        %v624 = vld [vmem:[%s290 + $0xe0] sm:$0xff]
        %v625 = vld [vmem:[%s290 + $0xe8] sm:$0xff]
        %v626 = vld [vmem:[%s290 + $0xf0] sm:$0xff]
        %v627 = vld [vmem:[%s290 + $0xf8] sm:$0xff]
        %v660 = vunpack.c.l.b16 %v596
        %v661 = vunpack.c.h.b16 %v596
        %v662 = vunpack.c.l.b16 %v597
        %v663 = vunpack.c.h.b16 %v597
        %v664 = vunpack.c.l.b16 %v598
        %v665 = vunpack.c.h.b16 %v598
        %v666 = vunpack.c.l.b16 %v599
        %v667 = vunpack.c.h.b16 %v599
        %v668 = vunpack.c.l.b16 %v600
        %v669 = vunpack.c.h.b16 %v600
        %v670 = vunpack.c.l.b16 %v601
        %v671 = vunpack.c.h.b16 %v601
        %v672 = vunpack.c.l.b16 %v602
        %v673 = vunpack.c.h.b16 %v602
        %v674 = vunpack.c.l.b16 %v603
        %v675 = vunpack.c.h.b16 %v603
        %v676 = vunpack.c.l.b16 %v604
        %v677 = vunpack.c.h.b16 %v604
        %v678 = vunpack.c.l.b16 %v605
        %v679 = vunpack.c.h.b16 %v605
        %v680 = vunpack.c.l.b16 %v606
        %v681 = vunpack.c.h.b16 %v606
        %v682 = vunpack.c.l.b16 %v607
        %v683 = vunpack.c.h.b16 %v607
        %v684 = vunpack.c.l.b16 %v608
        %v685 = vunpack.c.h.b16 %v608
        %v686 = vunpack.c.l.b16 %v609
        %v687 = vunpack.c.h.b16 %v609
        %v688 = vunpack.c.l.b16 %v610
        %v689 = vunpack.c.h.b16 %v610
        %v690 = vunpack.c.l.b16 %v611
        %v691 = vunpack.c.h.b16 %v611
        %v692 = vunpack.c.l.b16 %v612
        %v693 = vunpack.c.h.b16 %v612
        %v694 = vunpack.c.l.b16 %v613
        %v695 = vunpack.c.h.b16 %v613
        %v696 = vunpack.c.l.b16 %v614
        %v697 = vunpack.c.h.b16 %v614
        %v698 = vunpack.c.l.b16 %v615
        %v699 = vunpack.c.h.b16 %v615
        %v700 = vunpack.c.l.b16 %v616
        %v701 = vunpack.c.h.b16 %v616
        %v702 = vunpack.c.l.b16 %v617
        %v703 = vunpack.c.h.b16 %v617
        %v704 = vunpack.c.l.b16 %v618
        %v705 = vunpack.c.h.b16 %v618
        %v706 = vunpack.c.l.b16 %v619
        %v707 = vunpack.c.h.b16 %v619
        %v708 = vunpack.c.l.b16 %v620
        %v709 = vunpack.c.h.b16 %v620
        %v710 = vunpack.c.l.b16 %v621
        %v711 = vunpack.c.h.b16 %v621
        %v712 = vunpack.c.l.b16 %v622
        %v713 = vunpack.c.h.b16 %v622
        %v714 = vunpack.c.l.b16 %v623
        %v715 = vunpack.c.h.b16 %v623
        %v716 = vunpack.c.l.b16 %v624
        %v717 = vunpack.c.h.b16 %v624
        %v718 = vunpack.c.l.b16 %v625
        %v719 = vunpack.c.h.b16 %v625
        %v720 = vunpack.c.l.b16 %v626
        %v721 = vunpack.c.h.b16 %v626
        %v722 = vunpack.c.l.b16 %v627
        %v723 = vunpack.c.h.b16 %v627
        %v724 = vpack.c.b16 %v662, %v660
        %v725 = vpack.c.b16 %v663, %v661
        %v726 = vpack.c.b16 %v666, %v664
        %v727 = vpack.c.b16 %v667, %v665
        %v728 = vpack.c.b16 %v670, %v668
        %v729 = vpack.c.b16 %v671, %v669
        %v730 = vpack.c.b16 %v674, %v672
        %v731 = vpack.c.b16 %v675, %v673
        %v732 = vpack.c.b16 %v678, %v676
        %v733 = vpack.c.b16 %v679, %v677
        %v734 = vpack.c.b16 %v682, %v680
        %v735 = vpack.c.b16 %v683, %v681
        %v736 = vpack.c.b16 %v686, %v684
        %v737 = vpack.c.b16 %v687, %v685
        %v738 = vpack.c.b16 %v690, %v688
        %v739 = vpack.c.b16 %v691, %v689
        %v740 = vpack.c.b16 %v694, %v692
        %v741 = vpack.c.b16 %v695, %v693
        %v742 = vpack.c.b16 %v698, %v696
        %v743 = vpack.c.b16 %v699, %v697
        %v744 = vpack.c.b16 %v702, %v700
        %v745 = vpack.c.b16 %v703, %v701
        %v746 = vpack.c.b16 %v706, %v704
        %v747 = vpack.c.b16 %v707, %v705
        %v748 = vpack.c.b16 %v710, %v708
        %v749 = vpack.c.b16 %v711, %v709
        %v750 = vpack.c.b16 %v714, %v712
        %v751 = vpack.c.b16 %v715, %v713
        %v752 = vpack.c.b16 %v718, %v716
        %v753 = vpack.c.b16 %v719, %v717
        %v754 = vpack.c.b16 %v722, %v720
        %v755 = vpack.c.b16 %v723, %v721
        %788 = vmatpush.bf16.msra.mxu0 %v738
        %789 = vmatpush.bf16.msra.mxu0 %v736
        %790 = vmatpush.bf16.msra.mxu0 %v734
        %791 = vmatpush.bf16.msra.mxu0 %v732
        %792 = vmatpush.bf16.msra.mxu0 %v730
        %793 = vmatpush.bf16.msra.mxu0 %v728
        %794 = vmatpush.bf16.msra.mxu0 %v726
        %795 = vmatpush.bf16.msra.mxu0 %v724
        %796 = vmatmul.bf16.gmra.mxu0 %v376
        %v797 = vpop.f32.mrf.mxu0
        %v798 = vadd.f32 0.0, %v797
        %v799 = vpop.f32.mrf.mxu0
        %v800 = vadd.f32 0.0, %v799
        %801 = vdwg.mxu0
        %802 = vmatpush.bf16.msra.mxu0 %v754
        %803 = vmatpush.bf16.msra.mxu0 %v752
        %804 = vmatpush.bf16.msra.mxu0 %v750
        %805 = vmatpush.bf16.msra.mxu0 %v748
        %806 = vmatpush.bf16.msra.mxu0 %v746
        %807 = vmatpush.bf16.msra.mxu0 %v744
        %808 = vmatpush.bf16.msra.mxu0 %v742
        %809 = vmatpush.bf16.msra.mxu0 %v740
        %810 = vmatmul.bf16.gmra.mxu0 %v377
        %v811 = vpop.f32.mrf.mxu0
        %v812 = vadd.f32 %v798, %v811
        %v813 = vpop.f32.mrf.mxu0
        %v814 = vadd.f32 %v800, %v813
        %815 = vdwg.mxu0
        %816 = vmatpush.bf16.msra.mxu0 %v739
        %817 = vmatpush.bf16.msra.mxu0 %v737
        %818 = vmatpush.bf16.msra.mxu0 %v735
        %819 = vmatpush.bf16.msra.mxu0 %v733
        %820 = vmatpush.bf16.msra.mxu0 %v731
        %821 = vmatpush.bf16.msra.mxu0 %v729
        %822 = vmatpush.bf16.msra.mxu0 %v727
        %823 = vmatpush.bf16.msra.mxu0 %v725
        %824 = vmatmul.bf16.gmra.mxu0 %v376
        %v825 = vpop.f32.mrf.mxu0
        %v826 = vadd.f32 0.0, %v825
        %v827 = vpop.f32.mrf.mxu0
        %v828 = vadd.f32 0.0, %v827
        %829 = vdwg.mxu0
        %830 = vmatpush.bf16.msra.mxu0 %v755
        %831 = vmatpush.bf16.msra.mxu0 %v753
        %832 = vmatpush.bf16.msra.mxu0 %v751
        %833 = vmatpush.bf16.msra.mxu0 %v749
        %834 = vmatpush.bf16.msra.mxu0 %v747
        %835 = vmatpush.bf16.msra.mxu0 %v745
        %836 = vmatpush.bf16.msra.mxu0 %v743
        %837 = vmatpush.bf16.msra.mxu0 %v741
        %838 = vmatmul.bf16.gmra.mxu0 %v377
        %v839 = vpop.f32.mrf.mxu0
        %v840 = vadd.f32 %v826, %v839
        %v841 = vpop.f32.mrf.mxu0
        %v842 = vadd.f32 %v828, %v841
        %843 = vdwg.mxu0
        %v844 = vxor.u32 %v564, 2147483648
        %v845 = vxor.u32 %v592, 2147483648
        %v846 = vxor.u32 %v566, 2147483648
        %v847 = vxor.u32 %v594, 2147483648
        %v848 = vmul.f32 %v844, 1.442695
        %v849 = vpow.pop %v848
        %v850 = vmul.f32 %v845, 1.442695
        %v851 = vpow.pop %v850
        %v852 = vmul.f32 %v846, 1.442695
        %v853 = vpow.pop %v852
        %v854 = vmul.f32 %v847, 1.442695
        %v855 = vpow.pop %v854
        %v856 = vadd.f32 %v849, 1.0
        %v857 = vadd.f32 %v851, 1.0
        %v858 = vadd.f32 %v853, 1.0
        %v859 = vadd.f32 %v855, 1.0
        %v860 = vrcp.pop %v856
        %v861 = vmul.f32 %v856, %v860
        %v862 = vsub.f32 1.0, %v861
        %v863 = vmul.f32 %v860, %v862
        %v864 = vadd.f32 %v860, %v863
        %vm865 = vweird.f32 %v856
        %vm866 = vweird.f32 %v860
        %vm867 = vmor %vm865, %vm866
        %v868 = vsel %vm867, %v860, %v864
        %v869 = vand.u32 2147483647, %v856
        %vm870 = vcmp.eq.f32.partialorder %v869, 8.507059e+37
        %v871 = vand.u32 %v856, 2147483648
        %v872 = vor.u32 1.1754944e-38, %v871
        %v873 = vsel %vm870, %v872, %v868
        %v874 = vmul.f32 1.0, %v873
        %v875 = vrcp.pop %v857
        %v876 = vmul.f32 %v857, %v875
        %v877 = vsub.f32 1.0, %v876
        %v878 = vmul.f32 %v875, %v877
        %v879 = vadd.f32 %v875, %v878
        %vm880 = vweird.f32 %v857
        %vm881 = vweird.f32 %v875
        %vm882 = vmor %vm880, %vm881
        %v883 = vsel %vm882, %v875, %v879
        %v884 = vand.u32 2147483647, %v857
        %vm885 = vcmp.eq.f32.partialorder %v884, 8.507059e+37
        %v886 = vand.u32 %v857, 2147483648
        %v887 = vor.u32 1.1754944e-38, %v886
        %v888 = vsel %vm885, %v887, %v883
        %v889 = vmul.f32 1.0, %v888
        %v890 = vrcp.pop %v858
        %v891 = vmul.f32 %v858, %v890
        %v892 = vsub.f32 1.0, %v891
        %v893 = vmul.f32 %v890, %v892
        %v894 = vadd.f32 %v890, %v893
        %vm895 = vweird.f32 %v858
        %vm896 = vweird.f32 %v890
        %vm897 = vmor %vm895, %vm896
        %v898 = vsel %vm897, %v890, %v894
        %v899 = vand.u32 2147483647, %v858
        %vm900 = vcmp.eq.f32.partialorder %v899, 8.507059e+37
        %v901 = vand.u32 %v858, 2147483648
        %v902 = vor.u32 1.1754944e-38, %v901
        %v903 = vsel %vm900, %v902, %v898
        %v904 = vmul.f32 1.0, %v903
        %v905 = vrcp.pop %v859
        %v906 = vmul.f32 %v859, %v905
        %v907 = vsub.f32 1.0, %v906
        %v908 = vmul.f32 %v905, %v907
        %v909 = vadd.f32 %v905, %v908
        %vm910 = vweird.f32 %v859
        %vm911 = vweird.f32 %v905
        %vm912 = vmor %vm910, %vm911
        %v913 = vsel %vm912, %v905, %v909
        %v914 = vand.u32 2147483647, %v859
        %vm915 = vcmp.eq.f32.partialorder %v914, 8.507059e+37
        %v916 = vand.u32 %v859, 2147483648
        %v917 = vor.u32 1.1754944e-38, %v916
        %v918 = vsel %vm915, %v917, %v913
        %v919 = vmul.f32 1.0, %v918
        %v920 = vmul.f32 %v564, %v874
        %v921 = vmul.f32 %v592, %v889
        %v922 = vmul.f32 %v566, %v904
        %v923 = vmul.f32 %v594, %v919
        %v924 = vmul.f32 %v920, %v812
        %v925 = vmul.f32 %v921, %v840
        %v926 = vmul.f32 %v922, %v814
        %v927 = vmul.f32 %v923, %v842
        %v928 = vpack.c.bf16 %v926, %v924
        %v929 = vpack.c.bf16 %v927, %v925
        %v930 = vld [vmem:[%s300] sm:$0xff]
        %v931 = vld [vmem:[%s300 + $0x8] sm:$0xff]
        %v932 = vld [vmem:[%s300 + $0x10] sm:$0xff]
        %v933 = vld [vmem:[%s300 + $0x18] sm:$0xff]
        %v934 = vld [vmem:[%s300 + $0x20] sm:$0xff]
        %v935 = vld [vmem:[%s300 + $0x28] sm:$0xff]
        %v936 = vld [vmem:[%s300 + $0x30] sm:$0xff]
        %v937 = vld [vmem:[%s300 + $0x38] sm:$0xff]
        %v938 = vld [vmem:[%s300 + $0x40] sm:$0xff]
        %v939 = vld [vmem:[%s300 + $0x48] sm:$0xff]
        %v940 = vld [vmem:[%s300 + $0x50] sm:$0xff]
        %v941 = vld [vmem:[%s300 + $0x58] sm:$0xff]
        %v942 = vld [vmem:[%s300 + $0x60] sm:$0xff]
        %v943 = vld [vmem:[%s300 + $0x68] sm:$0xff]
        %v944 = vld [vmem:[%s300 + $0x70] sm:$0xff]
        %v945 = vld [vmem:[%s300 + $0x78] sm:$0xff]
        %v946 = vld [vmem:[%s300 + $0x80] sm:$0xff]
        %v947 = vld [vmem:[%s300 + $0x88] sm:$0xff]
        %v948 = vld [vmem:[%s300 + $0x90] sm:$0xff]
        %v949 = vld [vmem:[%s300 + $0x98] sm:$0xff]
        %v950 = vld [vmem:[%s300 + $0xa0] sm:$0xff]
        %v951 = vld [vmem:[%s300 + $0xa8] sm:$0xff]
        %v952 = vld [vmem:[%s300 + $0xb0] sm:$0xff]
        %v953 = vld [vmem:[%s300 + $0xb8] sm:$0xff]
        %v954 = vld [vmem:[%s300 + $0xc0] sm:$0xff]
        %v955 = vld [vmem:[%s300 + $0xc8] sm:$0xff]
        %v956 = vld [vmem:[%s300 + $0xd0] sm:$0xff]
        %v957 = vld [vmem:[%s300 + $0xd8] sm:$0xff]
        %v958 = vld [vmem:[%s300 + $0xe0] sm:$0xff]
        %v959 = vld [vmem:[%s300 + $0xe8] sm:$0xff]
        %v960 = vld [vmem:[%s300 + $0xf0] sm:$0xff]
        %v961 = vld [vmem:[%s300 + $0xf8] sm:$0xff]
        %v994 = vunpack.c.l.b16 %v930
        %v995 = vunpack.c.h.b16 %v930
        %v996 = vunpack.c.l.b16 %v931
        %v997 = vunpack.c.h.b16 %v931
        %v998 = vunpack.c.l.b16 %v932
        %v999 = vunpack.c.h.b16 %v932
        %v1000 = vunpack.c.l.b16 %v933
        %v1001 = vunpack.c.h.b16 %v933
        %v1002 = vunpack.c.l.b16 %v934
        %v1003 = vunpack.c.h.b16 %v934
        %v1004 = vunpack.c.l.b16 %v935
        %v1005 = vunpack.c.h.b16 %v935
        %v1006 = vunpack.c.l.b16 %v936
        %v1007 = vunpack.c.h.b16 %v936
        %v1008 = vunpack.c.l.b16 %v937
        %v1009 = vunpack.c.h.b16 %v937
        %v1010 = vunpack.c.l.b16 %v938
        %v1011 = vunpack.c.h.b16 %v938
        %v1012 = vunpack.c.l.b16 %v939
        %v1013 = vunpack.c.h.b16 %v939
        %v1014 = vunpack.c.l.b16 %v940
        %v1015 = vunpack.c.h.b16 %v940
        %v1016 = vunpack.c.l.b16 %v941
        %v1017 = vunpack.c.h.b16 %v941
        %v1018 = vunpack.c.l.b16 %v942
        %v1019 = vunpack.c.h.b16 %v942
        %v1020 = vunpack.c.l.b16 %v943
        %v1021 = vunpack.c.h.b16 %v943
        %v1022 = vunpack.c.l.b16 %v944
        %v1023 = vunpack.c.h.b16 %v944
        %v1024 = vunpack.c.l.b16 %v945
        %v1025 = vunpack.c.h.b16 %v945
        %v1026 = vunpack.c.l.b16 %v946
        %v1027 = vunpack.c.h.b16 %v946
        %v1028 = vunpack.c.l.b16 %v947
        %v1029 = vunpack.c.h.b16 %v947
        %v1030 = vunpack.c.l.b16 %v948
        %v1031 = vunpack.c.h.b16 %v948
        %v1032 = vunpack.c.l.b16 %v949
        %v1033 = vunpack.c.h.b16 %v949
        %v1034 = vunpack.c.l.b16 %v950
        %v1035 = vunpack.c.h.b16 %v950
        %v1036 = vunpack.c.l.b16 %v951
        %v1037 = vunpack.c.h.b16 %v951
        %v1038 = vunpack.c.l.b16 %v952
        %v1039 = vunpack.c.h.b16 %v952
        %v1040 = vunpack.c.l.b16 %v953
        %v1041 = vunpack.c.h.b16 %v953
        %v1042 = vunpack.c.l.b16 %v954
        %v1043 = vunpack.c.h.b16 %v954
        %v1044 = vunpack.c.l.b16 %v955
        %v1045 = vunpack.c.h.b16 %v955
        %v1046 = vunpack.c.l.b16 %v956
        %v1047 = vunpack.c.h.b16 %v956
        %v1048 = vunpack.c.l.b16 %v957
        %v1049 = vunpack.c.h.b16 %v957
        %v1050 = vunpack.c.l.b16 %v958
        %v1051 = vunpack.c.h.b16 %v958
        %v1052 = vunpack.c.l.b16 %v959
        %v1053 = vunpack.c.h.b16 %v959
        %v1054 = vunpack.c.l.b16 %v960
        %v1055 = vunpack.c.h.b16 %v960
        %v1056 = vunpack.c.l.b16 %v961
        %v1057 = vunpack.c.h.b16 %v961
        %v1058 = vpack.c.b16 %v996, %v994
        %v1059 = vpack.c.b16 %v997, %v995
        %v1060 = vpack.c.b16 %v1000, %v998
        %v1061 = vpack.c.b16 %v1001, %v999
        %v1062 = vpack.c.b16 %v1004, %v1002
        %v1063 = vpack.c.b16 %v1005, %v1003
        %v1064 = vpack.c.b16 %v1008, %v1006
        %v1065 = vpack.c.b16 %v1009, %v1007
        %v1066 = vpack.c.b16 %v1012, %v1010
        %v1067 = vpack.c.b16 %v1013, %v1011
        %v1068 = vpack.c.b16 %v1016, %v1014
        %v1069 = vpack.c.b16 %v1017, %v1015
        %v1070 = vpack.c.b16 %v1020, %v1018
        %v1071 = vpack.c.b16 %v1021, %v1019
        %v1072 = vpack.c.b16 %v1024, %v1022
        %v1073 = vpack.c.b16 %v1025, %v1023
        %v1074 = vpack.c.b16 %v1028, %v1026
        %v1075 = vpack.c.b16 %v1029, %v1027
        %v1076 = vpack.c.b16 %v1032, %v1030
        %v1077 = vpack.c.b16 %v1033, %v1031
        %v1078 = vpack.c.b16 %v1036, %v1034
        %v1079 = vpack.c.b16 %v1037, %v1035
        %v1080 = vpack.c.b16 %v1040, %v1038
        %v1081 = vpack.c.b16 %v1041, %v1039
        %v1082 = vpack.c.b16 %v1044, %v1042
        %v1083 = vpack.c.b16 %v1045, %v1043
        %v1084 = vpack.c.b16 %v1048, %v1046
        %v1085 = vpack.c.b16 %v1049, %v1047
        %v1086 = vpack.c.b16 %v1052, %v1050
        %v1087 = vpack.c.b16 %v1053, %v1051
        %v1088 = vpack.c.b16 %v1056, %v1054
        %v1089 = vpack.c.b16 %v1057, %v1055
        %1122 = vmatpush.bf16.msra.mxu0 %v1072
        %1123 = vmatpush.bf16.msra.mxu0 %v1070
        %1124 = vmatpush.bf16.msra.mxu0 %v1068
        %1125 = vmatpush.bf16.msra.mxu0 %v1066
        %1126 = vmatpush.bf16.msra.mxu0 %v1064
        %1127 = vmatpush.bf16.msra.mxu0 %v1062
        %1128 = vmatpush.bf16.msra.mxu0 %v1060
        %1129 = vmatpush.bf16.msra.mxu0 %v1058
        %1130 = vmatmul.bf16.gmra.mxu0 %v928
        %v1131 = vpop.f32.mrf.mxu0
        %v1132 = vadd.f32 0.0, %v1131
        %v1133 = vpop.f32.mrf.mxu0
        %v1134 = vadd.f32 0.0, %v1133
        %1135 = vdwg.mxu0
        %1136 = vmatpush.bf16.msra.mxu0 %v1088
        %1137 = vmatpush.bf16.msra.mxu0 %v1086
        %1138 = vmatpush.bf16.msra.mxu0 %v1084
        %1139 = vmatpush.bf16.msra.mxu0 %v1082
        %1140 = vmatpush.bf16.msra.mxu0 %v1080
        %1141 = vmatpush.bf16.msra.mxu0 %v1078
        %1142 = vmatpush.bf16.msra.mxu0 %v1076
        %1143 = vmatpush.bf16.msra.mxu0 %v1074
        %1144 = vmatmul.bf16.gmra.mxu0 %v929
        %v1145 = vpop.f32.mrf.mxu0
        %v1146 = vadd.f32 %v1132, %v1145
        %v1147 = vpop.f32.mrf.mxu0
        %v1148 = vadd.f32 %v1134, %v1147
        %1149 = vdwg.mxu0
        %1150 = vmatpush.bf16.msra.mxu0 %v1073
        %1151 = vmatpush.bf16.msra.mxu0 %v1071
        %1152 = vmatpush.bf16.msra.mxu0 %v1069
        %1153 = vmatpush.bf16.msra.mxu0 %v1067
        %1154 = vmatpush.bf16.msra.mxu0 %v1065
        %1155 = vmatpush.bf16.msra.mxu0 %v1063
        %1156 = vmatpush.bf16.msra.mxu0 %v1061
        %1157 = vmatpush.bf16.msra.mxu0 %v1059
        %1158 = vmatmul.bf16.gmra.mxu0 %v928
        %v1159 = vpop.f32.mrf.mxu0
        %v1160 = vadd.f32 0.0, %v1159
        %v1161 = vpop.f32.mrf.mxu0
        %v1162 = vadd.f32 0.0, %v1161
        %1163 = vdwg.mxu0
        %1164 = vmatpush.bf16.msra.mxu0 %v1089
        %1165 = vmatpush.bf16.msra.mxu0 %v1087
        %1166 = vmatpush.bf16.msra.mxu0 %v1085
        %1167 = vmatpush.bf16.msra.mxu0 %v1083
        %1168 = vmatpush.bf16.msra.mxu0 %v1081
        %1169 = vmatpush.bf16.msra.mxu0 %v1079
        %1170 = vmatpush.bf16.msra.mxu0 %v1077
        %1171 = vmatpush.bf16.msra.mxu0 %v1075
        %1172 = vmatmul.bf16.gmra.mxu0 %v929
        %v1173 = vpop.f32.mrf.mxu0
        %v1174 = vadd.f32 %v1160, %v1173
        %v1175 = vpop.f32.mrf.mxu0
        %v1176 = vadd.f32 %v1162, %v1175
        %1177 = vdwg.mxu0
        %p1178 = scmp.eq.s32.totalorder %s28, 0
        // Predicated region
        $region53: #{tpu_custom_call.1} parent=35 // pred_check
          %p1179 = pneg %p1178
        $region54: #{tpu_custom_call.1} parent=35 // pred_check_branch
          %1181 = sbr.rel (%p1179) target = $region56
        $region55: #{tpu_custom_call.1} parent=35 // pred_region
          %1182 = vst [vmem:[#allocation2] sm:$0xff] %v1146
          %1183 = vst [vmem:[#allocation2 + $0x8] sm:$0xff] %v1174
          %1184 = vst [vmem:[#allocation2 + $0x10] sm:$0xff] %v1148
          %1185 = vst [vmem:[#allocation2 + $0x18] sm:$0xff] %v1176
        $region56: #{tpu_custom_call.1} parent=35 // pred_fallthru
          _
        %p1186 = scmp.gt.s32.totalorder %s28, 0
        // Predicated region
        $region57: #{tpu_custom_call.1} parent=35 // pred_check
          %p1187 = pneg %p1186
        $region58: #{tpu_custom_call.1} parent=35 // pred_check_branch
          %1189 = sbr.rel (%p1187) target = $region60
        $region59: #{tpu_custom_call.1} parent=35 // pred_region
          %v1190 = vld [vmem:[#allocation2] sm:$0xff]
          %v1191 = vld [vmem:[#allocation2 + $0x8] sm:$0xff]
          %v1192 = vld [vmem:[#allocation2 + $0x10] sm:$0xff]
          %v1193 = vld [vmem:[#allocation2 + $0x18] sm:$0xff]
          %v1194 = vadd.f32 %v1190, %v1146
          %v1195 = vadd.f32 %v1191, %v1174
          %v1196 = vadd.f32 %v1192, %v1148
          %v1197 = vadd.f32 %v1193, %v1176
          %1198 = vst [vmem:[#allocation2] sm:$0xff] %v1194
          %1199 = vst [vmem:[#allocation2 + $0x8] sm:$0xff] %v1195
          %1200 = vst [vmem:[#allocation2 + $0x10] sm:$0xff] %v1196
          %1201 = vst [vmem:[#allocation2 + $0x18] sm:$0xff] %v1197
        $region60: #{tpu_custom_call.1} parent=35 // pred_fallthru
          _
        %p1202 = scmp.eq.s32.totalorder %s28, 1
        // Predicated region
        $region61: #{tpu_custom_call.1} parent=35 // pred_check
          %p1203 = pneg %p1202
        $region62: #{tpu_custom_call.1} parent=35 // pred_check_branch
          %1205 = sbr.rel (%p1203) target = $region64
        $region63: #{tpu_custom_call.1} parent=35 // pred_region
          %v1206 = vld [vmem:[#allocation2] sm:$0xff]
          %v1207 = vld [vmem:[#allocation2 + $0x8] sm:$0xff]
          %v1208 = vld [vmem:[#allocation2 + $0x10] sm:$0xff]
          %v1209 = vld [vmem:[#allocation2 + $0x18] sm:$0xff]
          %v1210 = vpack.c.bf16 %v1207, %v1206
          %v1211 = vpack.c.bf16 %v1209, %v1208
          %1212 = vst [vmem:[#allocation11] sm:$0xff] %v1210
          %1213 = vst [vmem:[#allocation11 + $0x8] sm:$0xff] %v1211
        $region64: #{tpu_custom_call.1} parent=35 // pred_fallthru
          _
        // Predicated region
        $region65: #{tpu_custom_call.1} parent=35 // pred_check
          %p1214 = pneg %p157
        $region66: #{tpu_custom_call.1} parent=35 // pred_check_branch
          %1216 = sbr.rel (%p1214) target = $region68
        $region67: #{tpu_custom_call.1} parent=35 // pred_region
          %s1217 = smul.u32 2, %s27
          %1219 = vsyncadd [#allocation5], 0
          %s1220 = smul.addr %s1217, 2
          %s1221 = smul.addr %s1220, 4
          %s1222 = scalar_lea.hbm %s4, %s1221
          %s1223 = sshll.u32 [#allocation11], 4
          %s1224 = int_to_ptr.vmem [resolvable:$true] %s1223
          %s1225 = sshll.u32 %s1222, 4
          %s1226 = int_to_ptr.hbm [resolvable:$true] %s1225
          %1231 = dma.vmem_to_hbm [thread:$0]  %s1224, 256, %s1226, [#allocation5], 128, 128, 8
        $region68: #{tpu_custom_call.1} parent=35 // pred_fallthru
          _
        // Predicated region
        $region69: #{tpu_custom_call.1} parent=35 // pred_check
          %p1232 = pneg %p157
        $region70: #{tpu_custom_call.1} parent=35 // pred_check_branch
          %1234 = sbr.rel (%p1232) target = $region72
        $region71: #{tpu_custom_call.1} parent=35 // pred_region
          %1236 = dma.done [#allocation5], 256
        $region72: #{tpu_custom_call.1} parent=35 // pred_fallthru
          _
      $region36: #{tpu_custom_call.1} parent=5 // pred_fallthru
        _
      %p1237 = scmp.le.s32.totalorder 2, %s18
      // Predicated region
      $region73: #{tpu_custom_call.1} parent=5 // pred_check
        %p1238 = pneg %p1237
      $region74: #{tpu_custom_call.1} parent=5 // pred_check_branch
        %1240 = sbr.rel (%p1238) target = $region76
      $region75: #{tpu_custom_call.1} parent=5 // pred_region
        %s1241 = ssub.s32 %s18, 2
      $region76: #{tpu_custom_call.1} parent=5 // pred_fallthru
        _
    $region6: #{tpu_custom_call.1} parent=1 // loop_footer
      %s22 = sadd.s32 1, %s18
    $region7: #{tpu_custom_call.1} parent=1 // loop_footer_branch
      %17 = sbr.rel target = $region3
    $region8: #{tpu_custom_call.1} parent=1 // loop_exit
      _
    %1242 = vsyncpa [#allocation4], 1
    %s1243 = scalar_lea.sflag [#allocation4], 1
    %1244 = vsyncpa %s1243, 1
    %1245 = vsyncpa [#allocation7], 1
    %s1246 = scalar_lea.sflag [#allocation7], 1
    %1247 = vsyncpa %s1246, 1
    %1248 = vsyncpa [#allocation10], 1
    %s1249 = scalar_lea.sflag [#allocation10], 1
    %1250 = vsyncpa %s1249, 1
    %1251 = vsyncpa [#allocation5], 1
    %s1252 = scalar_lea.sflag [#allocation5], 1
    %1253 = vsyncpa %s1252, 1

</llo_original>
